<compile_context>
chip_gen: v5e
topology: v5e:2x2
jax: 0.10.0
libtpu: 0.0.40
codegen_flags: <defaults>
</compile_context>

<pallas_src>
import functools

import jax
import jax.numpy as jnp
from jax.experimental import pallas as pl
from jax.experimental.pallas import tpu as pltpu


LAYER_DIMS = [(88, 64), (64, 32), (32, 16), (16, 32), (32, 64), (64, 88)]
_RELU_LAYERS = (0, 1, 3, 4)   # ReLU after these layers; layer 2 = latent, layer 5 = sigmoid
IN_FEATURES = 88
PAD = 128                     # lane width; hidden feature dims are zero-padded to this


# ----------------------------- Pallas kernel ---------------------------------
def _autoencoder_kernel(x_ref, w0_ref, w_ref, b_ref, out_ref):
    """Fused encoder+decoder forward for one (tile, 88) batch block.

    x_ref  : (tile, 88)     f32 input block (no lane padding; 88 = 11*8 sublanes).
    w0_ref : (88, 128)      bf16 first-layer weight, zero-padded to 128 output lanes.
    w_ref  : (4, 128, 128)  bf16 weight slab for layers 1, 2+3(fused), 4, 5 (zero-padded).
    b_ref  : (5, 1, 128)    f32 bias slab (b0, b1, b23, b4, b5), zero-padded.
    out_ref: (tile, 88)     f32 output block.
    """
    # Layer 0: (tile, 88) @ (88, 128) on the MXU, bf16 operands, f32 accumulation.
    h = jnp.dot(x_ref[...].astype(jnp.bfloat16), w0_ref[...],
                preferred_element_type=jnp.float32)
    h = jnp.maximum(h + b_ref[0], 0.0)

    # Layers 1, 2+3 (fused, exact: no activation on the bottleneck), 4, 5 as uniform
    # 128x128 bf16 matmuls; bias/ReLU stay f32.
    for i in range(4):
        h = jnp.dot(h.astype(jnp.bfloat16), w_ref[i],
                    preferred_element_type=jnp.float32) + b_ref[i + 1]
        if i < 3:
            h = jnp.maximum(h, 0.0)

    # Sigmoid (EUP exp path) on the 88 valid lanes, 88-wide store (no wrapper-side slice).
    out_ref[...] = jax.nn.sigmoid(h[:, :IN_FEATURES]).astype(out_ref.dtype)


# ------------------------------ Wrapper ---------------------------------------
def _choose_tile(batch, max_tile):
    """Pick a batch tile: single step for tiny batches, else >= 2 balanced grid steps."""
    b8 = max(8, ((batch + 7) // 8) * 8)
    if b8 <= 256:
        return b8                                   # latency-bound: one grid step
    steps = max(2, (b8 + max_tile - 1) // max_tile)  # >= 2 steps (v7x has 2 TensorCores)
    return (((b8 + steps - 1) // steps + 7) // 8) * 8


@functools.partial(jax.jit, static_argnames=("max_batch_tile",))
def autoencoder_forward(x, w0, w_slab, b_slab, *, max_batch_tile=2048):
    """x: (B, 88).  w0: (88,128) bf16, w_slab: (4,128,128) bf16, b_slab: (5,1,128) f32."""
    B, F = x.shape
    assert F == IN_FEATURES
    assert max_batch_tile % 8 == 0

    x = x.astype(jnp.float32)
    tile = _choose_tile(B, max_batch_tile)
    Bp = ((B + tile - 1) // tile) * tile

    # Pad the batch only when needed (zero extra copies when B is already a tile multiple).
    # TODO(synk): avoid this pad copy entirely for large non-multiple B via partial blocks.
    xp = x if Bp == B else jnp.zeros((Bp, F), jnp.float32).at[:B].set(x)

    grid = (Bp // tile,)

    cost = pl.CostEstimate(
        flops=2 * Bp * (F * PAD + 4 * PAD * PAD),          # 5 padded MXU matmuls
        transcendentals=2 * Bp * F,                        # sigmoid = exp + reciprocal
        bytes_accessed=(2 * Bp * F * 4                     # input + output (f32)
                        + int(w0.size) * 2 + int(w_slab.size) * 2   # bf16 weights
                        + int(b_slab.size) * 4),                    # f32 biases
    )

    out = pl.pallas_call(
        _autoencoder_kernel,
        grid=grid,
        in_specs=[
            pl.BlockSpec((tile, F), lambda i: (i, 0)),          # batch-tiled activations
            pl.BlockSpec((F, PAD), lambda i: (0, 0)),           # resident layer-0 weight
            pl.BlockSpec((4, PAD, PAD), lambda i: (0, 0, 0)),   # resident weight slab
            pl.BlockSpec((5, 1, PAD), lambda i: (0, 0, 0)),     # resident bias slab
        ],
        out_specs=pl.BlockSpec((tile, F), lambda i: (i, 0)),
        out_shape=jax.ShapeDtypeStruct((Bp, F), jnp.float32),
        compiler_params=pltpu.CompilerParams(
            dimension_semantics=("parallel",),
        ),
        cost_estimate=cost,
    )(xp, w0, w_slab, b_slab)

    return out if Bp == B else out[:B]


# --------------------------- Parameter init / packing -------------------------
def init_layer_params(key):
    """nn.Linear-style init U(-1/sqrt(in), 1/sqrt(in)); weights stored as (in, out)."""
    ws, bs = [], []
    for fan_in, fan_out in LAYER_DIMS:
        key, kw, kb = jax.random.split(key, 3)
        bound = 1.0 / float(fan_in) ** 0.5
        ws.append(jax.random.uniform(kw, (fan_in, fan_out), jnp.float32, -bound, bound))
        bs.append(jax.random.uniform(kb, (fan_out,), jnp.float32, -bound, bound))
    return ws, bs


def pack_params(ws, bs):
    """Fuse layers 2+3 (exact: no activation on the latent) and pack zero-padded slabs.

    Returns (w0: (88,128) bf16, w_slab: (4,128,128) bf16, b_slab: (5,1,128) f32).
    """
    w23 = ws[2] @ ws[3]            # (32, 32), computed in f32
    b23 = bs[2] @ ws[3] + bs[3]    # (32,)
    fused_ws = [ws[0], ws[1], w23, ws[4], ws[5]]
    fused_bs = [bs[0], bs[1], b23, bs[4], bs[5]]

    w0 = jnp.zeros((IN_FEATURES, PAD), jnp.float32)
    w0 = w0.at[:, :fused_ws[0].shape[1]].set(fused_ws[0]).astype(jnp.bfloat16)

    w_slab = jnp.zeros((4, PAD, PAD), jnp.float32)
    for i, w in enumerate(fused_ws[1:]):
        fi, fo = w.shape
        w_slab = w_slab.at[i, :fi, :fo].set(w)
    w_slab = w_slab.astype(jnp.bfloat16)

    b_slab = jnp.zeros((5, 1, PAD), jnp.float32)
    for i, b in enumerate(fused_bs):
        b_slab = b_slab.at[i, 0, :b.shape[0]].set(b)

    return w0, w_slab, b_slab


# ------------------------------ Reference -------------------------------------
def autoencoder_ref(x, ws, bs):
    h = x
    for i, (w, b) in enumerate(zip(ws, bs)):
        h = h @ w + b
        if i in _RELU_LAYERS:
            h = jnp.maximum(h, 0.0)
    return jax.nn.sigmoid(h)


if __name__ == "__main__":
    key = jax.random.PRNGKey(0)
    key, kx = jax.random.split(key)

    B = 50  # deliberately not a multiple of 8 to exercise the batch-padding path
    x = jax.random.uniform(kx, (B, 88), jnp.float32)

    ws, bs = init_layer_params(key)
    w0, w_slab, b_slab = pack_params(ws, bs)

    out = autoencoder_forward(x, w0, w_slab, b_slab)
    out = jax.block_until_ready(out)

    ref = autoencoder_ref(x, ws, bs)
    assert out.shape == (B, 88)
    max_err = float(jnp.max(jnp.abs(out - ref)))
    # bf16 matmul operands (f32 accumulation) vs. pure-f32 reference: relaxed tolerance.
    assert max_err < 3e-2, f"mismatch vs JAX f32 reference: max abs err {max_err}"

    print("KERNEL_OK")
</pallas_src>

<mosaic_0001>
module attributes {stable_mosaic.version = 11 : i64} {
  func.func @_autoencoder_kernel(%arg0: i32, %arg1: memref<56x88xf32, #tpu.memory_space<vmem>>, %arg2: memref<88x128xbf16, #tpu.memory_space<vmem>>, %arg3: memref<4x128x128xbf16, #tpu.memory_space<vmem>>, %arg4: memref<5x1x128xf32, #tpu.memory_space<vmem>>, %arg5: memref<56x88xf32, #tpu.memory_space<vmem>>) attributes {dimension_semantics = [#tpu.dimension_semantics<parallel>], iteration_bounds = array<i64: 1>, scalar_prefetch = 0 : i64, scratch_operands = 0 : i64, tpu.core_type = #tpu.core_type<tc>, window_params = [{transform_indices = @transform_0, window_bounds = array<i64: 56, 88>}, {pipeline_mode = #tpu.pipeline_mode<synchronous>, transform_indices = @transform_1, window_bounds = array<i64: 88, 128>}, {pipeline_mode = #tpu.pipeline_mode<synchronous>, transform_indices = @transform_2, window_bounds = array<i64: 4, 128, 128>}, {pipeline_mode = #tpu.pipeline_mode<synchronous>, transform_indices = @transform_3, window_bounds = array<i64: 5, 1, 128>}, {transform_indices = @transform_4, window_bounds = array<i64: 56, 88>}]} {
    %c0 = arith.constant 0 : index
    %c0_0 = arith.constant 0 : index
    %0 = vector.load %arg1[%c0, %c0_0] : memref<56x88xf32, #tpu.memory_space<vmem>>, vector<56x88xf32>
    %1 = arith.truncf %0 : vector<56x88xf32> to vector<56x88xbf16>
    %c0_1 = arith.constant 0 : index
    %c0_2 = arith.constant 0 : index
    %2 = vector.load %arg2[%c0_1, %c0_2] : memref<88x128xbf16, #tpu.memory_space<vmem>>, vector<88x128xbf16>
    %cst = arith.constant dense<0.000000e+00> : vector<56x128xf32>
    %3 = tpu.matmul %1, %2, %cst {dimension_numbers = #tpu.dot_dimension_numbers<[1], [0], [0], [1], [0, 0, 1, 1], [], []>} : vector<56x88xbf16>, vector<88x128xbf16>, vector<56x128xf32> -> vector<56x128xf32>
    %c0_3 = arith.constant 0 : index
    %c0_4 = arith.constant 0 : index
    %c0_5 = arith.constant 0 : index
    %4 = vector.load %arg4[%c0_3, %c0_4, %c0_5] : memref<5x1x128xf32, #tpu.memory_space<vmem>>, vector<1x1x128xf32>
    %5 = vector.shape_cast %4 : vector<1x1x128xf32> to vector<1x128xf32>
    %6 = vector.broadcast %5 : vector<1x128xf32> to vector<56x128xf32>
    %7 = arith.addf %3, %6 : vector<56x128xf32>
    %cst_6 = arith.constant 0.000000e+00 : f32
    %8 = vector.broadcast %cst_6 : f32 to vector<56x128xf32>
    %9 = arith.maximumf %7, %8 : vector<56x128xf32>
    %10 = arith.truncf %9 : vector<56x128xf32> to vector<56x128xbf16>
    %c0_7 = arith.constant 0 : index
    %c0_8 = arith.constant 0 : index
    %c0_9 = arith.constant 0 : index
    %11 = vector.load %arg3[%c0_7, %c0_8, %c0_9] : memref<4x128x128xbf16, #tpu.memory_space<vmem>>, vector<1x128x128xbf16>
    %12 = vector.shape_cast %11 : vector<1x128x128xbf16> to vector<128x128xbf16>
    %cst_10 = arith.constant dense<0.000000e+00> : vector<56x128xf32>
    %13 = tpu.matmul %10, %12, %cst_10 {dimension_numbers = #tpu.dot_dimension_numbers<[1], [0], [0], [1], [0, 0, 1, 1], [], []>} : vector<56x128xbf16>, vector<128x128xbf16>, vector<56x128xf32> -> vector<56x128xf32>
    %c1 = arith.constant 1 : index
    %c0_11 = arith.constant 0 : index
    %c0_12 = arith.constant 0 : index
    %14 = vector.load %arg4[%c1, %c0_11, %c0_12] : memref<5x1x128xf32, #tpu.memory_space<vmem>>, vector<1x1x128xf32>
    %15 = vector.shape_cast %14 : vector<1x1x128xf32> to vector<1x128xf32>
    %16 = vector.broadcast %15 : vector<1x128xf32> to vector<56x128xf32>
    %17 = arith.addf %13, %16 : vector<56x128xf32>
    %cst_13 = arith.constant 0.000000e+00 : f32
    %18 = vector.broadcast %cst_13 : f32 to vector<56x128xf32>
    %19 = arith.maximumf %17, %18 : vector<56x128xf32>
    %20 = arith.truncf %19 : vector<56x128xf32> to vector<56x128xbf16>
    %c1_14 = arith.constant 1 : index
    %c0_15 = arith.constant 0 : index
    %c0_16 = arith.constant 0 : index
    %21 = vector.load %arg3[%c1_14, %c0_15, %c0_16] : memref<4x128x128xbf16, #tpu.memory_space<vmem>>, vector<1x128x128xbf16>
    %22 = vector.shape_cast %21 : vector<1x128x128xbf16> to vector<128x128xbf16>
    %cst_17 = arith.constant dense<0.000000e+00> : vector<56x128xf32>
    %23 = tpu.matmul %20, %22, %cst_17 {dimension_numbers = #tpu.dot_dimension_numbers<[1], [0], [0], [1], [0, 0, 1, 1], [], []>} : vector<56x128xbf16>, vector<128x128xbf16>, vector<56x128xf32> -> vector<56x128xf32>
    %c2 = arith.constant 2 : index
    %c0_18 = arith.constant 0 : index
    %c0_19 = arith.constant 0 : index
    %24 = vector.load %arg4[%c2, %c0_18, %c0_19] : memref<5x1x128xf32, #tpu.memory_space<vmem>>, vector<1x1x128xf32>
    %25 = vector.shape_cast %24 : vector<1x1x128xf32> to vector<1x128xf32>
    %26 = vector.broadcast %25 : vector<1x128xf32> to vector<56x128xf32>
    %27 = arith.addf %23, %26 : vector<56x128xf32>
    %cst_20 = arith.constant 0.000000e+00 : f32
    %28 = vector.broadcast %cst_20 : f32 to vector<56x128xf32>
    %29 = arith.maximumf %27, %28 : vector<56x128xf32>
    %30 = arith.truncf %29 : vector<56x128xf32> to vector<56x128xbf16>
    %c2_21 = arith.constant 2 : index
    %c0_22 = arith.constant 0 : index
    %c0_23 = arith.constant 0 : index
    %31 = vector.load %arg3[%c2_21, %c0_22, %c0_23] : memref<4x128x128xbf16, #tpu.memory_space<vmem>>, vector<1x128x128xbf16>
    %32 = vector.shape_cast %31 : vector<1x128x128xbf16> to vector<128x128xbf16>
    %cst_24 = arith.constant dense<0.000000e+00> : vector<56x128xf32>
    %33 = tpu.matmul %30, %32, %cst_24 {dimension_numbers = #tpu.dot_dimension_numbers<[1], [0], [0], [1], [0, 0, 1, 1], [], []>} : vector<56x128xbf16>, vector<128x128xbf16>, vector<56x128xf32> -> vector<56x128xf32>
    %c3 = arith.constant 3 : index
    %c0_25 = arith.constant 0 : index
    %c0_26 = arith.constant 0 : index
    %34 = vector.load %arg4[%c3, %c0_25, %c0_26] : memref<5x1x128xf32, #tpu.memory_space<vmem>>, vector<1x1x128xf32>
    %35 = vector.shape_cast %34 : vector<1x1x128xf32> to vector<1x128xf32>
    %36 = vector.broadcast %35 : vector<1x128xf32> to vector<56x128xf32>
    %37 = arith.addf %33, %36 : vector<56x128xf32>
    %cst_27 = arith.constant 0.000000e+00 : f32
    %38 = vector.broadcast %cst_27 : f32 to vector<56x128xf32>
    %39 = arith.maximumf %37, %38 : vector<56x128xf32>
    %40 = arith.truncf %39 : vector<56x128xf32> to vector<56x128xbf16>
    %c3_28 = arith.constant 3 : index
    %c0_29 = arith.constant 0 : index
    %c0_30 = arith.constant 0 : index
    %41 = vector.load %arg3[%c3_28, %c0_29, %c0_30] : memref<4x128x128xbf16, #tpu.memory_space<vmem>>, vector<1x128x128xbf16>
    %42 = vector.shape_cast %41 : vector<1x128x128xbf16> to vector<128x128xbf16>
    %cst_31 = arith.constant dense<0.000000e+00> : vector<56x128xf32>
    %43 = tpu.matmul %40, %42, %cst_31 {dimension_numbers = #tpu.dot_dimension_numbers<[1], [0], [0], [1], [0, 0, 1, 1], [], []>} : vector<56x128xbf16>, vector<128x128xbf16>, vector<56x128xf32> -> vector<56x128xf32>
    %c4 = arith.constant 4 : index
    %c0_32 = arith.constant 0 : index
    %c0_33 = arith.constant 0 : index
    %44 = vector.load %arg4[%c4, %c0_32, %c0_33] : memref<5x1x128xf32, #tpu.memory_space<vmem>>, vector<1x1x128xf32>
    %45 = vector.shape_cast %44 : vector<1x1x128xf32> to vector<1x128xf32>
    %46 = vector.broadcast %45 : vector<1x128xf32> to vector<56x128xf32>
    %47 = arith.addf %43, %46 : vector<56x128xf32>
    %48 = vector.extract_strided_slice %47 {offsets = [0, 0], sizes = [56, 88], strides = [1, 1]} : vector<56x128xf32> to vector<56x88xf32>
    %49 = arith.negf %48 : vector<56x88xf32>
    %50 = math.exp %49 : vector<56x88xf32>
    %cst_34 = arith.constant 1.000000e+00 : f32
    %51 = vector.broadcast %cst_34 : f32 to vector<56x88xf32>
    %52 = arith.addf %51, %50 : vector<56x88xf32>
    %53 = arith.divf %51, %52 : vector<56x88xf32>
    %c0_35 = arith.constant 0 : index
    %c0_36 = arith.constant 0 : index
    %54 = vector.load %arg5[%c0_35, %c0_36] : memref<56x88xf32, #tpu.memory_space<vmem>>, vector<56x88xf32>
    tpu.vector_store %arg5[%c0_35, %c0_36], %53 {strides = array<i32>} : memref<56x88xf32, #tpu.memory_space<vmem>>, vector<56x88xf32>,
    return
  }
  func.func @transform_0(%arg0: i32) -> (i32, i32) {
    %c0_i32 = arith.constant 0 : i32
    %c0_i32_0 = arith.constant 0 : i32
    return %arg0, %c0_i32 : i32, i32
  }
  func.func @transform_1(%arg0: i32) -> (i32, i32) {
    %c0_i32 = arith.constant 0 : i32
    %c0_i32_0 = arith.constant 0 : i32
    %c0_i32_1 = arith.constant 0 : i32
    return %c0_i32, %c0_i32_0 : i32, i32
  }
  func.func @transform_2(%arg0: i32) -> (i32, i32, i32) {
    %c0_i32 = arith.constant 0 : i32
    %c0_i32_0 = arith.constant 0 : i32
    %c0_i32_1 = arith.constant 0 : i32
    %c0_i32_2 = arith.constant 0 : i32
    return %c0_i32, %c0_i32_0, %c0_i32_1 : i32, i32, i32
  }
  func.func @transform_3(%arg0: i32) -> (i32, i32, i32) {
    %c0_i32 = arith.constant 0 : i32
    %c0_i32_0 = arith.constant 0 : i32
    %c0_i32_1 = arith.constant 0 : i32
    %c0_i32_2 = arith.constant 0 : i32
    return %c0_i32, %c0_i32_0, %c0_i32_1 : i32, i32, i32
  }
  func.func @transform_4(%arg0: i32) -> (i32, i32) {
    %c0_i32 = arith.constant 0 : i32
    %c0_i32_0 = arith.constant 0 : i32
    return %arg0, %c0_i32 : i32, i32
  }
}

</mosaic_0001>

<llo_original>
// kernel: autoencoder_forward.1
$region0: #{autoencoder_forward.1}
  #allocation0 [shape = 'u32[]', space=smem, size = 0x4, offset = 0x4, fixed_abs, tag = 'smem constant byte address 0x4 - core index']
  #allocation1 [shape = 'u32[72,128]{1,0:T(1,128)}', space=vmem, size = 0x9000, scoped, tag = 'internal scratch']
  %s0 = inlined_call_operand.vmem [shape: f32[56,88], index: 0, kind: input, shape index: {}]
  %s1 = inlined_call_operand.vmem [shape: bf16[88,128], index: 1, kind: input, shape index: {}]
  %s2 = inlined_call_operand.hbm [shape: bf16[4,128,128], index: 2, kind: input, shape index: {}]
  %s3 = inlined_call_operand.vmem [shape: f32[5,1,128], index: 3, kind: input, shape index: {}]
  %s4 = inlined_call_operand.hbm [shape: f32[56,88], index: 4, kind: output, shape index: {}]
  %s5 = sld [smem:[#allocation0]]
  $region30: #{autoencoder_forward.1} parent=0
    _
  %s7 = ssub.s32 1, %s5
  %s8 = scalar_select 0, %s7, %s5
  $region1: #{autoencoder_forward.1} parent=0
    #allocation2 [shape = 'u8[131072]{0}', space=vmem, size = 0x20000, scoped, tag = 'input window, operand 2, single buffered']
    #allocation3 [shape = 's32[1]{0}', space=sflag, size = 0x4, scoped, tag = 'scoped memory for autoencoder_forward.1']
    #allocation4 [shape = 's32[1]{0}', space=sflag, size = 0x4, scoped, tag = 'scoped memory for autoencoder_forward.1']
    #allocation5 [shape = 'u8[28672]{0}', space=vmem, size = 0x7000, scoped, tag = 'output window, operand 0, single buffered']
    %9 = vsyncpa [#allocation3], 0
    %10 = vsyncpa [#allocation4], 0
    // Predicated region
    $region2: #{autoencoder_forward.1} parent=1 // pred_check
      _
    $region3: #{autoencoder_forward.1} parent=1 // pred_check_branch
      %12 = sbr.rel (0) target = $region5
    $region4: #{autoencoder_forward.1} parent=1 // pred_region
      _
    $region5: #{autoencoder_forward.1} parent=1 // pred_fallthru
      _
    // Predicated region
    $region6: #{autoencoder_forward.1} parent=1 // pred_check
      _
    $region7: #{autoencoder_forward.1} parent=1 // pred_check_branch
      %14 = sbr.rel (0) target = $region9
    $region8: #{autoencoder_forward.1} parent=1 // pred_region
      _
    $region9: #{autoencoder_forward.1} parent=1 // pred_fallthru
      _
    // Predicated region
    $region10: #{autoencoder_forward.1} parent=1 // pred_check
      _
    $region11: #{autoencoder_forward.1} parent=1 // pred_check_branch
      %16 = sbr.rel (0) target = $region13
    $region12: #{autoencoder_forward.1} parent=1 // pred_region
      %18 = vsyncadd [#allocation3], 0
      %s19 = sshll.u32 %s2, 4
      %s20 = int_to_ptr.hbm [resolvable:$true] %s19
      %s21 = sshll.u32 [#allocation2], 4
      %s22 = int_to_ptr.vmem [resolvable:$true] %s21
      %27 = dma.hbm_to_vmem [thread:$0]  %s20, 4096, %s22, [#allocation3], 64, 64, 4
    $region13: #{autoencoder_forward.1} parent=1 // pred_fallthru
      _
    // Predicated region
    $region14: #{autoencoder_forward.1} parent=1 // pred_check
      _
    $region15: #{autoencoder_forward.1} parent=1 // pred_check_branch
      %29 = sbr.rel (0) target = $region17
    $region16: #{autoencoder_forward.1} parent=1 // pred_region
      _
    $region17: #{autoencoder_forward.1} parent=1 // pred_fallthru
      _
    // Predicated region
    $region18: #{autoencoder_forward.1} parent=1 // pred_check
      _
    $region19: #{autoencoder_forward.1} parent=1 // pred_check_branch
      %31 = sbr.rel (0) target = $region21
    $region20: #{autoencoder_forward.1} parent=1 // pred_region
      %33 = dma.done [#allocation3], 4096
    $region21: #{autoencoder_forward.1} parent=1 // pred_fallthru
      _
    %v35 = vld [vmem:[%s0] sm:$0xff]
    %v36 = vld [vmem:[%s0 + $0x8] sm:$0xff]
    %v37 = vld [vmem:[%s0 + $0x10] sm:$0xff]
    %v38 = vld [vmem:[%s0 + $0x18] sm:$0xff]
    %v39 = vld [vmem:[%s0 + $0x20] sm:$0xff]
    %v40 = vld [vmem:[%s0 + $0x28] sm:$0xff]
    %v41 = vld [vmem:[%s0 + $0x30] sm:$0xff]
    %v42 = vpack.c.bf16 %v36, %v35
    %v43 = vpack.c.bf16 %v38, %v37
    %v44 = vpack.c.bf16 %v40, %v39
    %v45 = vpack.c.bf16 %v41, %v41
    %v46 = vld [vmem:[%s1] sm:$0xf]
    %v47 = vld [vmem:[%s1 + $0x4] sm:$0xf]
    %v48 = vld [vmem:[%s1 + $0x8] sm:$0xf]
    %v49 = vld [vmem:[%s1 + $0xc] sm:$0xf]
    %v50 = vld [vmem:[%s1 + $0x10] sm:$0xf]
    %v51 = vld [vmem:[%s1 + $0x14] sm:$0xf]
    %v52 = vld [vmem:[%s1 + $0x18] sm:$0xf]
    %v53 = vld [vmem:[%s1 + $0x1c] sm:$0xf]
    %v54 = vld [vmem:[%s1 + $0x20] sm:$0xf]
    %v55 = vld [vmem:[%s1 + $0x24] sm:$0xf]
    %v56 = vld [vmem:[%s1 + $0x28] sm:$0xf]
    %v57 = vld [vmem:[%s3] sm:$0x1]
    %v59 = vperm.slane %v57, 0
    %v72 = vunpack.c.l.b16 %v46
    %v73 = vunpack.c.l.b16 %v47
    %v74 = vunpack.c.l.b16 %v48
    %v75 = vunpack.c.l.b16 %v49
    %v76 = vunpack.c.l.b16 %v50
    %v77 = vunpack.c.l.b16 %v51
    %v78 = vunpack.c.l.b16 %v52
    %v79 = vunpack.c.l.b16 %v53
    %v80 = vunpack.c.l.b16 %v54
    %v81 = vunpack.c.l.b16 %v55
    %v82 = vunpack.c.l.b16 %v56
    %v83 = vpack.c.b16 %v73, %v72
    %v84 = vpack.c.b16 %v75, %v74
    %v85 = vpack.c.b16 %v77, %v76
    %v86 = vpack.c.b16 %v79, %v78
    %v87 = vpack.c.b16 %v81, %v80
    %v88 = vpack.c.b16 %v82, %v82
    %vm94 = vcmask 719872
    %v96 = vsel %vm94, %v42, 0
    %v99 = vsel %vm94, %v43, 0
    %v102 = vsel %vm94, %v44, 0
    %v105 = vsel %vm94, %v45, 0
    %vm107 = vcmask 1043456
    %v109 = vsel %vm107, %v88, 0
    %111 = vmatpush.bf16.msra.mxu0 0
    %112 = vmatpush.bf16.msra.mxu0 0
    %113 = vmatpush.bf16.msra.mxu0 %v109
    %114 = vmatpush.bf16.msra.mxu0 %v87
    %115 = vmatpush.bf16.msra.mxu0 %v86
    %116 = vmatpush.bf16.msra.mxu0 %v85
    %117 = vmatpush.bf16.msra.mxu0 %v84
    %118 = vmatpush.bf16.msra.mxu0 %v83
    %119 = vmatmul.bf16.gmra.mxu0 %v96
    %v120 = vpop.f32.mrf.mxu0
    %v121 = vadd.f32 %v59, %v120
    %v122 = vpop.f32.mrf.mxu0
    %v123 = vadd.f32 %v59, %v122
    %124 = vmatmul.bf16.gmra.mxu0 %v99
    %v125 = vpop.f32.mrf.mxu0
    %v126 = vadd.f32 %v59, %v125
    %v127 = vpop.f32.mrf.mxu0
    %v128 = vadd.f32 %v59, %v127
    %129 = vmatmul.bf16.gmra.mxu0 %v102
    %v130 = vpop.f32.mrf.mxu0
    %v131 = vadd.f32 %v59, %v130
    %v132 = vpop.f32.mrf.mxu0
    %v133 = vadd.f32 %v59, %v132
    %134 = vmatmul.bf16.gmra.mxu0 %v105
    %v135 = vpop.f32.mrf.mxu0
    %v136 = vadd.f32 %v59, %v135
    %v137 = vpop.f32.mrf.mxu0
    %138 = vdwg.mxu0
    %v139 = vmax.f32 %v121, 0.0
    %v140 = vmax.f32 %v123, 0.0
    %v141 = vmax.f32 %v126, 0.0
    %v142 = vmax.f32 %v128, 0.0
    %v143 = vmax.f32 %v131, 0.0
    %v144 = vmax.f32 %v133, 0.0
    %v145 = vmax.f32 %v136, 0.0
    %v146 = vpack.c.bf16 %v140, %v139
    %v147 = vpack.c.bf16 %v142, %v141
    %v148 = vpack.c.bf16 %v144, %v143
    %v149 = vpack.c.bf16 %v145, %v145
    %v150 = vld [vmem:[#allocation2] sm:$0xf]
    %v151 = vld [vmem:[#allocation2 + $0x4] sm:$0xf]
    %v152 = vld [vmem:[#allocation2 + $0x8] sm:$0xf]
    %v153 = vld [vmem:[#allocation2 + $0xc] sm:$0xf]
    %v154 = vld [vmem:[#allocation2 + $0x10] sm:$0xf]
    %v155 = vld [vmem:[#allocation2 + $0x14] sm:$0xf]
    %v156 = vld [vmem:[#allocation2 + $0x18] sm:$0xf]
    %v157 = vld [vmem:[#allocation2 + $0x1c] sm:$0xf]
    %v158 = vld [vmem:[#allocation2 + $0x20] sm:$0xf]
    %v159 = vld [vmem:[#allocation2 + $0x24] sm:$0xf]
    %v160 = vld [vmem:[#allocation2 + $0x28] sm:$0xf]
    %v161 = vld [vmem:[#allocation2 + $0x2c] sm:$0xf]
    %v162 = vld [vmem:[#allocation2 + $0x30] sm:$0xf]
    %v163 = vld [vmem:[#allocation2 + $0x34] sm:$0xf]
    %v164 = vld [vmem:[#allocation2 + $0x38] sm:$0xf]
    %v165 = vld [vmem:[#allocation2 + $0x3c] sm:$0xf]
    %s166 = scalar_lea.vmem %s3, 1
    %v167 = vld [vmem:[%s166] sm:$0x1]
    %v169 = vperm.slane %v167, 0
    %v187 = vunpack.c.l.b16 %v150
    %v188 = vunpack.c.l.b16 %v151
    %v189 = vunpack.c.l.b16 %v152
    %v190 = vunpack.c.l.b16 %v153
    %v191 = vunpack.c.l.b16 %v154
    %v192 = vunpack.c.l.b16 %v155
    %v193 = vunpack.c.l.b16 %v156
    %v194 = vunpack.c.l.b16 %v157
    %v195 = vunpack.c.l.b16 %v158
    %v196 = vunpack.c.l.b16 %v159
    %v197 = vunpack.c.l.b16 %v160
    %v198 = vunpack.c.l.b16 %v161
    %v199 = vunpack.c.l.b16 %v162
    %v200 = vunpack.c.l.b16 %v163
    %v201 = vunpack.c.l.b16 %v164
    %v202 = vunpack.c.l.b16 %v165
    %v203 = vpack.c.b16 %v188, %v187
    %v204 = vpack.c.b16 %v190, %v189
    %v205 = vpack.c.b16 %v192, %v191
    %v206 = vpack.c.b16 %v194, %v193
    %v207 = vpack.c.b16 %v196, %v195
    %v208 = vpack.c.b16 %v198, %v197
    %v209 = vpack.c.b16 %v200, %v199
    %v210 = vpack.c.b16 %v202, %v201
    %219 = vmatpush.bf16.msra.mxu0 %v210
    %220 = vmatpush.bf16.msra.mxu0 %v209
    %221 = vmatpush.bf16.msra.mxu0 %v208
    %222 = vmatpush.bf16.msra.mxu0 %v207
    %223 = vmatpush.bf16.msra.mxu0 %v206
    %224 = vmatpush.bf16.msra.mxu0 %v205
    %225 = vmatpush.bf16.msra.mxu0 %v204
    %226 = vmatpush.bf16.msra.mxu0 %v203
    %227 = vmatmul.bf16.gmra.mxu0 %v146
    %v228 = vpop.f32.mrf.mxu0
    %v229 = vadd.f32 %v169, %v228
    %v230 = vpop.f32.mrf.mxu0
    %v231 = vadd.f32 %v169, %v230
    %232 = vmatmul.bf16.gmra.mxu0 %v147
    %v233 = vpop.f32.mrf.mxu0
    %v234 = vadd.f32 %v169, %v233
    %v235 = vpop.f32.mrf.mxu0
    %v236 = vadd.f32 %v169, %v235
    %237 = vmatmul.bf16.gmra.mxu0 %v148
    %v238 = vpop.f32.mrf.mxu0
    %v239 = vadd.f32 %v169, %v238
    %v240 = vpop.f32.mrf.mxu0
    %v241 = vadd.f32 %v169, %v240
    %242 = vmatmul.bf16.gmra.mxu0 %v149
    %v243 = vpop.f32.mrf.mxu0
    %v244 = vadd.f32 %v169, %v243
    %v245 = vpop.f32.mrf.mxu0
    %246 = vdwg.mxu0
    %v247 = vmax.f32 %v229, 0.0
    %v248 = vmax.f32 %v231, 0.0
    %v249 = vmax.f32 %v234, 0.0
    %v250 = vmax.f32 %v236, 0.0
    %v251 = vmax.f32 %v239, 0.0
    %v252 = vmax.f32 %v241, 0.0
    %v253 = vmax.f32 %v244, 0.0
    %v254 = vpack.c.bf16 %v248, %v247
    %v255 = vpack.c.bf16 %v250, %v249
    %v256 = vpack.c.bf16 %v252, %v251
    %v257 = vpack.c.bf16 %v253, %v253
    %s258 = scalar_lea.vmem [#allocation2], 64
    %v259 = vld [vmem:[%s258] sm:$0xf]
    %v260 = vld [vmem:[%s258 + $0x4] sm:$0xf]
    %v261 = vld [vmem:[%s258 + $0x8] sm:$0xf]
    %v262 = vld [vmem:[%s258 + $0xc] sm:$0xf]
    %v263 = vld [vmem:[%s258 + $0x10] sm:$0xf]
    %v264 = vld [vmem:[%s258 + $0x14] sm:$0xf]
    %v265 = vld [vmem:[%s258 + $0x18] sm:$0xf]
    %v266 = vld [vmem:[%s258 + $0x1c] sm:$0xf]
    %v267 = vld [vmem:[%s258 + $0x20] sm:$0xf]
    %v268 = vld [vmem:[%s258 + $0x24] sm:$0xf]
    %v269 = vld [vmem:[%s258 + $0x28] sm:$0xf]
    %v270 = vld [vmem:[%s258 + $0x2c] sm:$0xf]
    %v271 = vld [vmem:[%s258 + $0x30] sm:$0xf]
    %v272 = vld [vmem:[%s258 + $0x34] sm:$0xf]
    %v273 = vld [vmem:[%s258 + $0x38] sm:$0xf]
    %v274 = vld [vmem:[%s258 + $0x3c] sm:$0xf]
    %s275 = scalar_lea.vmem %s3, 2
    %v276 = vld [vmem:[%s275] sm:$0x1]
    %v278 = vperm.slane %v276, 0
    %v296 = vunpack.c.l.b16 %v259
    %v297 = vunpack.c.l.b16 %v260
    %v298 = vunpack.c.l.b16 %v261
    %v299 = vunpack.c.l.b16 %v262
    %v300 = vunpack.c.l.b16 %v263
    %v301 = vunpack.c.l.b16 %v264
    %v302 = vunpack.c.l.b16 %v265
    %v303 = vunpack.c.l.b16 %v266
    %v304 = vunpack.c.l.b16 %v267
    %v305 = vunpack.c.l.b16 %v268
    %v306 = vunpack.c.l.b16 %v269
    %v307 = vunpack.c.l.b16 %v270
    %v308 = vunpack.c.l.b16 %v271
    %v309 = vunpack.c.l.b16 %v272
    %v310 = vunpack.c.l.b16 %v273
    %v311 = vunpack.c.l.b16 %v274
    %v312 = vpack.c.b16 %v297, %v296
    %v313 = vpack.c.b16 %v299, %v298
    %v314 = vpack.c.b16 %v301, %v300
    %v315 = vpack.c.b16 %v303, %v302
    %v316 = vpack.c.b16 %v305, %v304
    %v317 = vpack.c.b16 %v307, %v306
    %v318 = vpack.c.b16 %v309, %v308
    %v319 = vpack.c.b16 %v311, %v310
    %328 = vmatpush.bf16.msra.mxu0 %v319
    %329 = vmatpush.bf16.msra.mxu0 %v318
    %330 = vmatpush.bf16.msra.mxu0 %v317
    %331 = vmatpush.bf16.msra.mxu0 %v316
    %332 = vmatpush.bf16.msra.mxu0 %v315
    %333 = vmatpush.bf16.msra.mxu0 %v314
    %334 = vmatpush.bf16.msra.mxu0 %v313
    %335 = vmatpush.bf16.msra.mxu0 %v312
    %336 = vmatmul.bf16.gmra.mxu0 %v254
    %v337 = vpop.f32.mrf.mxu0
    %v338 = vadd.f32 %v278, %v337
    %v339 = vpop.f32.mrf.mxu0
    %v340 = vadd.f32 %v278, %v339
    %341 = vmatmul.bf16.gmra.mxu0 %v255
    %v342 = vpop.f32.mrf.mxu0
    %v343 = vadd.f32 %v278, %v342
    %v344 = vpop.f32.mrf.mxu0
    %v345 = vadd.f32 %v278, %v344
    %346 = vmatmul.bf16.gmra.mxu0 %v256
    %v347 = vpop.f32.mrf.mxu0
    %v348 = vadd.f32 %v278, %v347
    %v349 = vpop.f32.mrf.mxu0
    %v350 = vadd.f32 %v278, %v349
    %351 = vmatmul.bf16.gmra.mxu0 %v257
    %v352 = vpop.f32.mrf.mxu0
    %v353 = vadd.f32 %v278, %v352
    %v354 = vpop.f32.mrf.mxu0
    %355 = vdwg.mxu0
    %v356 = vmax.f32 %v338, 0.0
    %v357 = vmax.f32 %v340, 0.0
    %v358 = vmax.f32 %v343, 0.0
    %v359 = vmax.f32 %v345, 0.0
    %v360 = vmax.f32 %v348, 0.0
    %v361 = vmax.f32 %v350, 0.0
    %v362 = vmax.f32 %v353, 0.0
    %v363 = vpack.c.bf16 %v357, %v356
    %v364 = vpack.c.bf16 %v359, %v358
    %v365 = vpack.c.bf16 %v361, %v360
    %v366 = vpack.c.bf16 %v362, %v362
    %s367 = scalar_lea.vmem [#allocation2], 128
    %v368 = vld [vmem:[%s367] sm:$0xf]
    %v369 = vld [vmem:[%s367 + $0x4] sm:$0xf]
    %v370 = vld [vmem:[%s367 + $0x8] sm:$0xf]
    %v371 = vld [vmem:[%s367 + $0xc] sm:$0xf]
    %v372 = vld [vmem:[%s367 + $0x10] sm:$0xf]
    %v373 = vld [vmem:[%s367 + $0x14] sm:$0xf]
    %v374 = vld [vmem:[%s367 + $0x18] sm:$0xf]
    %v375 = vld [vmem:[%s367 + $0x1c] sm:$0xf]
    %v376 = vld [vmem:[%s367 + $0x20] sm:$0xf]
    %v377 = vld [vmem:[%s367 + $0x24] sm:$0xf]
    %v378 = vld [vmem:[%s367 + $0x28] sm:$0xf]
    %v379 = vld [vmem:[%s367 + $0x2c] sm:$0xf]
    %v380 = vld [vmem:[%s367 + $0x30] sm:$0xf]
    %v381 = vld [vmem:[%s367 + $0x34] sm:$0xf]
    %v382 = vld [vmem:[%s367 + $0x38] sm:$0xf]
    %v383 = vld [vmem:[%s367 + $0x3c] sm:$0xf]
    %s384 = scalar_lea.vmem %s3, 3
    %v385 = vld [vmem:[%s384] sm:$0x1]
    %v387 = vperm.slane %v385, 0
    %v405 = vunpack.c.l.b16 %v368
    %v406 = vunpack.c.l.b16 %v369
    %v407 = vunpack.c.l.b16 %v370
    %v408 = vunpack.c.l.b16 %v371
    %v409 = vunpack.c.l.b16 %v372
    %v410 = vunpack.c.l.b16 %v373
    %v411 = vunpack.c.l.b16 %v374
    %v412 = vunpack.c.l.b16 %v375
    %v413 = vunpack.c.l.b16 %v376
    %v414 = vunpack.c.l.b16 %v377
    %v415 = vunpack.c.l.b16 %v378
    %v416 = vunpack.c.l.b16 %v379
    %v417 = vunpack.c.l.b16 %v380
    %v418 = vunpack.c.l.b16 %v381
    %v419 = vunpack.c.l.b16 %v382
    %v420 = vunpack.c.l.b16 %v383
    %v421 = vpack.c.b16 %v406, %v405
    %v422 = vpack.c.b16 %v408, %v407
    %v423 = vpack.c.b16 %v410, %v409
    %v424 = vpack.c.b16 %v412, %v411
    %v425 = vpack.c.b16 %v414, %v413
    %v426 = vpack.c.b16 %v416, %v415
    %v427 = vpack.c.b16 %v418, %v417
    %v428 = vpack.c.b16 %v420, %v419
    %437 = vmatpush.bf16.msra.mxu0 %v428
    %438 = vmatpush.bf16.msra.mxu0 %v427
    %439 = vmatpush.bf16.msra.mxu0 %v426
    %440 = vmatpush.bf16.msra.mxu0 %v425
    %441 = vmatpush.bf16.msra.mxu0 %v424
    %442 = vmatpush.bf16.msra.mxu0 %v423
    %443 = vmatpush.bf16.msra.mxu0 %v422
    %444 = vmatpush.bf16.msra.mxu0 %v421
    %445 = vmatmul.bf16.gmra.mxu0 %v363
    %v446 = vpop.f32.mrf.mxu0
    %v447 = vadd.f32 %v387, %v446
    %v448 = vpop.f32.mrf.mxu0
    %v449 = vadd.f32 %v387, %v448
    %450 = vmatmul.bf16.gmra.mxu0 %v364
    %v451 = vpop.f32.mrf.mxu0
    %v452 = vadd.f32 %v387, %v451
    %v453 = vpop.f32.mrf.mxu0
    %v454 = vadd.f32 %v387, %v453
    %455 = vmatmul.bf16.gmra.mxu0 %v365
    %v456 = vpop.f32.mrf.mxu0
    %v457 = vadd.f32 %v387, %v456
    %v458 = vpop.f32.mrf.mxu0
    %v459 = vadd.f32 %v387, %v458
    %460 = vmatmul.bf16.gmra.mxu0 %v366
    %v461 = vpop.f32.mrf.mxu0
    %v462 = vadd.f32 %v387, %v461
    %v463 = vpop.f32.mrf.mxu0
    %464 = vdwg.mxu0
    %v465 = vmax.f32 %v447, 0.0
    %v466 = vmax.f32 %v449, 0.0
    %v467 = vmax.f32 %v452, 0.0
    %v468 = vmax.f32 %v454, 0.0
    %v469 = vmax.f32 %v457, 0.0
    %v470 = vmax.f32 %v459, 0.0
    %v471 = vmax.f32 %v462, 0.0
    %v472 = vpack.c.bf16 %v466, %v465
    %v473 = vpack.c.bf16 %v468, %v467
    %v474 = vpack.c.bf16 %v470, %v469
    %v475 = vpack.c.bf16 %v471, %v471
    %s476 = scalar_lea.vmem [#allocation2], 192
    %v477 = vld [vmem:[%s476] sm:$0xf]
    %v478 = vld [vmem:[%s476 + $0x4] sm:$0xf]
    %v479 = vld [vmem:[%s476 + $0x8] sm:$0xf]
    %v480 = vld [vmem:[%s476 + $0xc] sm:$0xf]
    %v481 = vld [vmem:[%s476 + $0x10] sm:$0xf]
    %v482 = vld [vmem:[%s476 + $0x14] sm:$0xf]
    %v483 = vld [vmem:[%s476 + $0x18] sm:$0xf]
    %v484 = vld [vmem:[%s476 + $0x1c] sm:$0xf]
    %v485 = vld [vmem:[%s476 + $0x20] sm:$0xf]
    %v486 = vld [vmem:[%s476 + $0x24] sm:$0xf]
    %v487 = vld [vmem:[%s476 + $0x28] sm:$0xf]
    %v488 = vld [vmem:[%s476 + $0x2c] sm:$0xf]
    %v489 = vld [vmem:[%s476 + $0x30] sm:$0xf]
    %v490 = vld [vmem:[%s476 + $0x34] sm:$0xf]
    %v491 = vld [vmem:[%s476 + $0x38] sm:$0xf]
    %v492 = vld [vmem:[%s476 + $0x3c] sm:$0xf]
    %s493 = scalar_lea.vmem %s3, 4
    %v494 = vld [vmem:[%s493] sm:$0x1]
    %v496 = vperm.slane %v494, 0
    %v514 = vunpack.c.l.b16 %v477
    %v515 = vunpack.c.l.b16 %v478
    %v516 = vunpack.c.l.b16 %v479
    %v517 = vunpack.c.l.b16 %v480
    %v518 = vunpack.c.l.b16 %v481
    %v519 = vunpack.c.l.b16 %v482
    %v520 = vunpack.c.l.b16 %v483
    %v521 = vunpack.c.l.b16 %v484
    %v522 = vunpack.c.l.b16 %v485
    %v523 = vunpack.c.l.b16 %v486
    %v524 = vunpack.c.l.b16 %v487
    %v525 = vunpack.c.l.b16 %v488
    %v526 = vunpack.c.l.b16 %v489
    %v527 = vunpack.c.l.b16 %v490
    %v528 = vunpack.c.l.b16 %v491
    %v529 = vunpack.c.l.b16 %v492
    %v530 = vpack.c.b16 %v515, %v514
    %v531 = vpack.c.b16 %v517, %v516
    %v532 = vpack.c.b16 %v519, %v518
    %v533 = vpack.c.b16 %v521, %v520
    %v534 = vpack.c.b16 %v523, %v522
    %v535 = vpack.c.b16 %v525, %v524
    %v536 = vpack.c.b16 %v527, %v526
    %v537 = vpack.c.b16 %v529, %v528
    %546 = vmatpush.bf16.msra.mxu0 %v537
    %547 = vmatpush.bf16.msra.mxu0 %v536
    %548 = vmatpush.bf16.msra.mxu0 %v535
    %549 = vmatpush.bf16.msra.mxu0 %v534
    %550 = vmatpush.bf16.msra.mxu0 %v533
    %551 = vmatpush.bf16.msra.mxu0 %v532
    %552 = vmatpush.bf16.msra.mxu0 %v531
    %553 = vmatpush.bf16.msra.mxu0 %v530
    %554 = vmatmul.bf16.gmra.mxu0 %v472
    %v555 = vpop.f32.mrf.mxu0
    %v556 = vadd.f32 %v496, %v555
    %v557 = vpop.f32.mrf.mxu0
    %v558 = vadd.f32 %v496, %v557
    %559 = vmatmul.bf16.gmra.mxu0 %v473
    %v560 = vpop.f32.mrf.mxu0
    %v561 = vadd.f32 %v496, %v560
    %v562 = vpop.f32.mrf.mxu0
    %v563 = vadd.f32 %v496, %v562
    %564 = vmatmul.bf16.gmra.mxu0 %v474
    %v565 = vpop.f32.mrf.mxu0
    %v566 = vadd.f32 %v496, %v565
    %v567 = vpop.f32.mrf.mxu0
    %v568 = vadd.f32 %v496, %v567
    %569 = vmatmul.bf16.gmra.mxu0 %v475
    %v570 = vpop.f32.mrf.mxu0
    %v571 = vadd.f32 %v496, %v570
    %v572 = vpop.f32.mrf.mxu0
    %573 = vdwg.mxu0
    %v574 = vxor.u32 %v556, 2147483648
    %v575 = vxor.u32 %v558, 2147483648
    %v576 = vxor.u32 %v561, 2147483648
    %v577 = vxor.u32 %v563, 2147483648
    %v578 = vxor.u32 %v566, 2147483648
    %v579 = vxor.u32 %v568, 2147483648
    %v580 = vxor.u32 %v571, 2147483648
    %v581 = vmul.f32 %v574, 1.442695
    %v582 = vpow.pop %v581
    %v583 = vmul.f32 %v575, 1.442695
    %v584 = vpow.pop %v583
    %v585 = vmul.f32 %v576, 1.442695
    %v586 = vpow.pop %v585
    %v587 = vmul.f32 %v577, 1.442695
    %v588 = vpow.pop %v587
    %v589 = vmul.f32 %v578, 1.442695
    %v590 = vpow.pop %v589
    %v591 = vmul.f32 %v579, 1.442695
    %v592 = vpow.pop %v591
    %v593 = vmul.f32 %v580, 1.442695
    %v594 = vpow.pop %v593
    %v595 = vadd.f32 %v582, 1.0
    %v596 = vadd.f32 %v584, 1.0
    %v597 = vadd.f32 %v586, 1.0
    %v598 = vadd.f32 %v588, 1.0
    %v599 = vadd.f32 %v590, 1.0
    %v600 = vadd.f32 %v592, 1.0
    %v601 = vadd.f32 %v594, 1.0
    %v602 = vrcp.pop %v595
    %v603 = vmul.f32 %v595, %v602
    %v604 = vsub.f32 1.0, %v603
    %v605 = vmul.f32 %v602, %v604
    %v606 = vadd.f32 %v602, %v605
    %vm607 = vweird.f32 %v595
    %vm608 = vweird.f32 %v602
    %vm609 = vmor %vm607, %vm608
    %v610 = vsel %vm609, %v602, %v606
    %v611 = vand.u32 2147483647, %v595
    %vm612 = vcmp.eq.f32.partialorder %v611, 8.507059e+37
    %v613 = vand.u32 %v595, 2147483648
    %v614 = vor.u32 1.1754944e-38, %v613
    %v615 = vsel %vm612, %v614, %v610
    %v616 = vmul.f32 1.0, %v615
    %v617 = vrcp.pop %v596
    %v618 = vmul.f32 %v596, %v617
    %v619 = vsub.f32 1.0, %v618
    %v620 = vmul.f32 %v617, %v619
    %v621 = vadd.f32 %v617, %v620
    %vm622 = vweird.f32 %v596
    %vm623 = vweird.f32 %v617
    %vm624 = vmor %vm622, %vm623
    %v625 = vsel %vm624, %v617, %v621
    %v626 = vand.u32 2147483647, %v596
    %vm627 = vcmp.eq.f32.partialorder %v626, 8.507059e+37
    %v628 = vand.u32 %v596, 2147483648
    %v629 = vor.u32 1.1754944e-38, %v628
    %v630 = vsel %vm627, %v629, %v625
    %v631 = vmul.f32 1.0, %v630
    %v632 = vrcp.pop %v597
    %v633 = vmul.f32 %v597, %v632
    %v634 = vsub.f32 1.0, %v633
    %v635 = vmul.f32 %v632, %v634
    %v636 = vadd.f32 %v632, %v635
    %vm637 = vweird.f32 %v597
    %vm638 = vweird.f32 %v632
    %vm639 = vmor %vm637, %vm638
    %v640 = vsel %vm639, %v632, %v636
    %v641 = vand.u32 2147483647, %v597
    %vm642 = vcmp.eq.f32.partialorder %v641, 8.507059e+37
    %v643 = vand.u32 %v597, 2147483648
    %v644 = vor.u32 1.1754944e-38, %v643
    %v645 = vsel %vm642, %v644, %v640
    %v646 = vmul.f32 1.0, %v645
    %v647 = vrcp.pop %v598
    %v648 = vmul.f32 %v598, %v647
    %v649 = vsub.f32 1.0, %v648
    %v650 = vmul.f32 %v647, %v649
    %v651 = vadd.f32 %v647, %v650
    %vm652 = vweird.f32 %v598
    %vm653 = vweird.f32 %v647
    %vm654 = vmor %vm652, %vm653
    %v655 = vsel %vm654, %v647, %v651
    %v656 = vand.u32 2147483647, %v598
    %vm657 = vcmp.eq.f32.partialorder %v656, 8.507059e+37
    %v658 = vand.u32 %v598, 2147483648
    %v659 = vor.u32 1.1754944e-38, %v658
    %v660 = vsel %vm657, %v659, %v655
    %v661 = vmul.f32 1.0, %v660
    %v662 = vrcp.pop %v599
    %v663 = vmul.f32 %v599, %v662
    %v664 = vsub.f32 1.0, %v663
    %v665 = vmul.f32 %v662, %v664
    %v666 = vadd.f32 %v662, %v665
    %vm667 = vweird.f32 %v599
    %vm668 = vweird.f32 %v662
    %vm669 = vmor %vm667, %vm668
    %v670 = vsel %vm669, %v662, %v666
    %v671 = vand.u32 2147483647, %v599
    %vm672 = vcmp.eq.f32.partialorder %v671, 8.507059e+37
    %v673 = vand.u32 %v599, 2147483648
    %v674 = vor.u32 1.1754944e-38, %v673
    %v675 = vsel %vm672, %v674, %v670
    %v676 = vmul.f32 1.0, %v675
    %v677 = vrcp.pop %v600
    %v678 = vmul.f32 %v600, %v677
    %v679 = vsub.f32 1.0, %v678
    %v680 = vmul.f32 %v677, %v679
    %v681 = vadd.f32 %v677, %v680
    %vm682 = vweird.f32 %v600
    %vm683 = vweird.f32 %v677
    %vm684 = vmor %vm682, %vm683
    %v685 = vsel %vm684, %v677, %v681
    %v686 = vand.u32 2147483647, %v600
    %vm687 = vcmp.eq.f32.partialorder %v686, 8.507059e+37
    %v688 = vand.u32 %v600, 2147483648
    %v689 = vor.u32 1.1754944e-38, %v688
    %v690 = vsel %vm687, %v689, %v685
    %v691 = vmul.f32 1.0, %v690
    %v692 = vrcp.pop %v601
    %v693 = vmul.f32 %v601, %v692
    %v694 = vsub.f32 1.0, %v693
    %v695 = vmul.f32 %v692, %v694
    %v696 = vadd.f32 %v692, %v695
    %vm697 = vweird.f32 %v601
    %vm698 = vweird.f32 %v692
    %vm699 = vmor %vm697, %vm698
    %v700 = vsel %vm699, %v692, %v696
    %v701 = vand.u32 2147483647, %v601
    %vm702 = vcmp.eq.f32.partialorder %v701, 8.507059e+37
    %v703 = vand.u32 %v601, 2147483648
    %v704 = vor.u32 1.1754944e-38, %v703
    %v705 = vsel %vm702, %v704, %v700
    %v706 = vmul.f32 1.0, %v705
    %707 = vst.msk [vmem:[#allocation5] sm:$0xff] %vm94, %v616
    %708 = vst.msk [vmem:[#allocation5 + $0x8] sm:$0xff] %vm94, %v631
    %709 = vst.msk [vmem:[#allocation5 + $0x10] sm:$0xff] %vm94, %v646
    %710 = vst.msk [vmem:[#allocation5 + $0x18] sm:$0xff] %vm94, %v661
    %711 = vst.msk [vmem:[#allocation5 + $0x20] sm:$0xff] %vm94, %v676
    %712 = vst.msk [vmem:[#allocation5 + $0x28] sm:$0xff] %vm94, %v691
    %713 = vst.msk [vmem:[#allocation5 + $0x30] sm:$0xff] %vm94, %v706
    // Predicated region
    $region22: #{autoencoder_forward.1} parent=1 // pred_check
      _
    $region23: #{autoencoder_forward.1} parent=1 // pred_check_branch
      %715 = sbr.rel (0) target = $region25
    $region24: #{autoencoder_forward.1} parent=1 // pred_region
      %717 = vsyncadd [#allocation4], 0
      %s718 = sshll.u32 [#allocation5], 4
      %s719 = int_to_ptr.vmem [resolvable:$true] %s718
      %s720 = sshll.u32 %s4, 4
      %s721 = int_to_ptr.hbm [resolvable:$true] %s720
      %726 = dma.vmem_to_hbm [thread:$0]  %s719, 896, %s721, [#allocation4], 128, 128, 8
    $region25: #{autoencoder_forward.1} parent=1 // pred_fallthru
      _
    // Predicated region
    $region26: #{autoencoder_forward.1} parent=1 // pred_check
      _
    $region27: #{autoencoder_forward.1} parent=1 // pred_check_branch
      %728 = sbr.rel (0) target = $region29
    $region28: #{autoencoder_forward.1} parent=1 // pred_region
      %730 = dma.done [#allocation4], 896
    $region29: #{autoencoder_forward.1} parent=1 // pred_fallthru
      _
    %731 = vsyncpa [#allocation3], 1
    %732 = vsyncpa [#allocation4], 1

</llo_original>
